<compile_context>
chip_gen: v7x
topology: tpu7x:2x2x1
jax: 0.10.0
libtpu: 0.0.40
codegen_flags: <defaults>
</compile_context>

<pallas_src>
import functools

import jax
import jax.numpy as jnp
from jax.experimental import pallas as pl
from jax.experimental.pallas import tpu as pltpu

LOG_STD_MIN = -20.0
LOG_STD_MAX = 2.0

_MXU_DTYPE = jnp.bfloat16  # MXU operand dtype (accumulation stays fp32)


def _round_up(x, m):
    return (x + m - 1) // m * m


def _choose_tile_b(batch):
    """Batch tile: multiple of 16, large enough to amortize ~0.35us/step,
    and >= 2 grid steps for batch > 256 so both v7x TensorCores get work."""
    if batch <= 256:
        return _round_up(batch, 16)
    return min(512, _round_up((batch + 1) // 2, 16))


def _policy_kernel(action_dim,
                   state_ref, w1_ref, b1_ref, w2_ref, b2_ref, wh_ref, bh_ref,
                   out_ref):
    # Hidden layer 1: relu(state @ W1 + b1).  State is fp32 in HBM; cast to
    # bf16 here (no extra wrapper pad/cast pass over HBM).
    x = jnp.dot(state_ref[...].astype(w1_ref.dtype), w1_ref[...],
                preferred_element_type=jnp.float32)
    x = jnp.maximum(x + b1_ref[...], 0.0)

    # Hidden layer 2: relu(x @ W2 + b2).
    x = jnp.dot(x.astype(w2_ref.dtype), w2_ref[...],
                preferred_element_type=jnp.float32)
    x = jnp.maximum(x + b2_ref[...], 0.0)

    # Fused heads: one wide matmul producing
    #   [mean | z_mean | log_std | z_log_std | pad].
    y = jnp.dot(x.astype(wh_ref.dtype), wh_ref[...],
                preferred_element_type=jnp.float32)
    y = y + bh_ref[...]

    # Clamp every column from action_dim+1 onward (log_std, z_log_std and the
    # padded tail, which is sliced away) -- one lane-dense compare + select.
    col = jax.lax.broadcasted_iota(jnp.int32, y.shape, dimension=1)
    y = jnp.where(col >= action_dim + 1,
                  jnp.clip(y, LOG_STD_MIN, LOG_STD_MAX), y)

    out_ref[...] = y.astype(out_ref.dtype)


def prepare_params(params):
    """One-time weight prep (pad to TPU tiles, cast to bf16, fuse the four
    heads).  Call once, outside the per-step hot path."""
    state_dim, hidden_dim = params["w1"].shape
    action_dim = params["wm"].shape[1]
    h_pad = _round_up(hidden_dim, 128)
    o_pad = _round_up(2 * action_dim + 2, 128)

    def pad2(a, rows, cols):
        return jnp.pad(a, ((0, rows - a.shape[0]), (0, cols - a.shape[1])))

    # Head layout [mean | z_mean | log_std | z_log_std]: clamped columns are a
    # single contiguous range starting at action_dim + 1.
    wh = jnp.concatenate(
        [params["wm"], params["wzm"], params["wl"], params["wzl"]], axis=1)
    bh = jnp.concatenate(
        [params["bm"], params["bzm"], params["bl"], params["bzl"]], axis=1)

    return {
        # W1 keeps K = state_dim (unpadded) so the state read is not lane-amplified.
        "w1": pad2(params["w1"], state_dim, h_pad).astype(_MXU_DTYPE),
        "b1": pad2(params["b1"], 1, h_pad).astype(jnp.float32),
        "w2": pad2(params["w2"], h_pad, h_pad).astype(_MXU_DTYPE),
        "b2": pad2(params["b2"], 1, h_pad).astype(jnp.float32),
        "wh": pad2(wh, h_pad, o_pad).astype(_MXU_DTYPE),
        "bh": pad2(bh, 1, o_pad).astype(jnp.float32),
    }


@functools.partial(jax.jit, static_argnames=("action_dim",))
def policy_forward(state, prepped, *, action_dim):
    """PolicyNetwork.forward: returns (mean, log_std, z_mean, z_log_std)."""
    batch, state_dim = state.shape
    h_pad = prepped["w1"].shape[1]
    o_pad = prepped["wh"].shape[1]

    tile_b = _choose_tile_b(batch)
    b_pad = _round_up(batch, tile_b)
    if b_pad != batch:
        state = jnp.pad(state, ((0, b_pad - batch), (0, 0)))

    grid = (b_pad // tile_b,)
    kernel = functools.partial(_policy_kernel, action_dim)

    # Weights are pinned (index_map -> (0, 0)); at hidden_dim <= ~1024 they are
    # tiny, so default double-buffering is harmless.  If hidden_dim is ever
    # scaled to 2-4k, single-buffer the weight specs / tile K to fit v7x VMEM.
    out = pl.pallas_call(
        kernel,
        out_shape=jax.ShapeDtypeStruct((b_pad, o_pad), _MXU_DTYPE),
        grid=grid,
        in_specs=[
            pl.BlockSpec((tile_b, state_dim), lambda i: (i, 0)),  # fp32 state tile
            pl.BlockSpec((state_dim, h_pad), lambda i: (0, 0)),   # W1 (resident)
            pl.BlockSpec((1, h_pad), lambda i: (0, 0)),           # b1
            pl.BlockSpec((h_pad, h_pad), lambda i: (0, 0)),       # W2 (resident)
            pl.BlockSpec((1, h_pad), lambda i: (0, 0)),           # b2
            pl.BlockSpec((h_pad, o_pad), lambda i: (0, 0)),       # fused head W
            pl.BlockSpec((1, o_pad), lambda i: (0, 0)),           # fused head b
        ],
        out_specs=pl.BlockSpec((tile_b, o_pad), lambda i: (i, 0)),
        compiler_params=pltpu.CompilerParams(
            dimension_semantics=("parallel",)),
    )(state, prepped["w1"], prepped["b1"], prepped["w2"], prepped["b2"],
      prepped["wh"], prepped["bh"])

    head = out[:batch, :2 * action_dim + 2].astype(jnp.float32)
    mean = head[:, :action_dim]
    z_mean = head[:, action_dim:action_dim + 1]
    log_std = head[:, action_dim + 1:2 * action_dim + 1]
    z_log_std = head[:, 2 * action_dim + 1:2 * action_dim + 2]
    return mean, log_std, z_mean, z_log_std


def _xavier_uniform(key, fan_in, fan_out, gain=1.0):
    # Matches torch.nn.init.xavier_uniform_ (gain=1).  Stored as W.T, i.e.
    # (in_features, out_features), so the kernel does row-major matmuls.
    a = gain * jnp.sqrt(6.0 / (fan_in + fan_out))
    return jax.random.uniform(
        key, (fan_in, fan_out), minval=-a, maxval=a, dtype=jnp.float32)


def init_params(key, state_dim, action_dim, hidden_dim):
    keys = jax.random.split(key, 6)
    return {
        "w1": _xavier_uniform(keys[0], state_dim, hidden_dim),
        "b1": jnp.zeros((1, hidden_dim), jnp.float32),
        "w2": _xavier_uniform(keys[1], hidden_dim, hidden_dim),
        "b2": jnp.zeros((1, hidden_dim), jnp.float32),
        "wm": _xavier_uniform(keys[2], hidden_dim, action_dim),
        "bm": jnp.zeros((1, action_dim), jnp.float32),
        "wl": _xavier_uniform(keys[3], hidden_dim, action_dim),
        "bl": jnp.zeros((1, action_dim), jnp.float32),
        "wzm": _xavier_uniform(keys[4], hidden_dim, 1),
        "bzm": jnp.zeros((1, 1), jnp.float32),
        "wzl": _xavier_uniform(keys[5], hidden_dim, 1),
        "bzl": jnp.zeros((1, 1), jnp.float32),
    }


def _reference_forward(state, params):
    # Pure-JAX reference mirroring the kernel's bf16-operand / fp32-accum math
    # and the bf16 output write.
    def bdot(a, b):
        return jnp.dot(a.astype(_MXU_DTYPE), b.astype(_MXU_DTYPE),
                       preferred_element_type=jnp.float32)

    x = jnp.maximum(bdot(state, params["w1"]) + params["b1"], 0.0)
    x = jnp.maximum(bdot(x, params["w2"]) + params["b2"], 0.0)
    mean = bdot(x, params["wm"]) + params["bm"]
    log_std = jnp.clip(bdot(x, params["wl"]) + params["bl"],
                       LOG_STD_MIN, LOG_STD_MAX)
    z_mean = bdot(x, params["wzm"]) + params["bzm"]
    z_log_std = jnp.clip(bdot(x, params["wzl"]) + params["bzl"],
                         LOG_STD_MIN, LOG_STD_MAX)

    def out_round(t):  # mirror the kernel's bf16 output slab
        return t.astype(_MXU_DTYPE).astype(jnp.float32)

    return (out_round(mean), out_round(log_std),
            out_round(z_mean), out_round(z_log_std))


if __name__ == "__main__":
    # Small shapes consistent with the module: state -> hidden -> heads.
    batch, state_dim, action_dim, hidden_dim = 8, 16, 4, 32

    key = jax.random.PRNGKey(0)
    pkey, skey = jax.random.split(key)
    params = init_params(pkey, state_dim, action_dim, hidden_dim)
    state = jax.random.normal(skey, (batch, state_dim), dtype=jnp.float32)

    # One-time weight prep (outside the hot path).
    prepped = prepare_params(params)
    prepped = jax.tree_util.tree_map(jax.block_until_ready, prepped)

    outs = jax.block_until_ready(
        policy_forward(state, prepped, action_dim=action_dim))
    refs = _reference_forward(state, params)

    for o, r in zip(outs, refs):
        assert o.shape == r.shape and o.dtype == r.dtype
        assert jnp.allclose(o, r, atol=2e-2, rtol=2e-2)

    print("KERNEL_OK")
</pallas_src>

<mosaic_0001>
module attributes {stable_mosaic.version = 11 : i64} {
  func.func @_policy_kernel(%arg0: i32, %arg1: memref<16x16xf32, #tpu.memory_space<vmem>>, %arg2: memref<16x128xbf16, #tpu.memory_space<vmem>>, %arg3: memref<1x128xf32, #tpu.memory_space<vmem>>, %arg4: memref<128x128xbf16, #tpu.memory_space<vmem>>, %arg5: memref<1x128xf32, #tpu.memory_space<vmem>>, %arg6: memref<128x128xbf16, #tpu.memory_space<vmem>>, %arg7: memref<1x128xf32, #tpu.memory_space<vmem>>, %arg8: memref<16x128xbf16, #tpu.memory_space<vmem>>) attributes {dimension_semantics = [#tpu.dimension_semantics<parallel>], iteration_bounds = array<i64: 1>, scalar_prefetch = 0 : i64, scratch_operands = 0 : i64, tpu.core_type = #tpu.core_type<tc>, window_params = [{transform_indices = @transform_0, window_bounds = array<i64: 16, 16>}, {pipeline_mode = #tpu.pipeline_mode<synchronous>, transform_indices = @transform_1, window_bounds = array<i64: 16, 128>}, {pipeline_mode = #tpu.pipeline_mode<synchronous>, transform_indices = @transform_2, window_bounds = array<i64: 1, 128>}, {pipeline_mode = #tpu.pipeline_mode<synchronous>, transform_indices = @transform_3, window_bounds = array<i64: 128, 128>}, {pipeline_mode = #tpu.pipeline_mode<synchronous>, transform_indices = @transform_4, window_bounds = array<i64: 1, 128>}, {pipeline_mode = #tpu.pipeline_mode<synchronous>, transform_indices = @transform_5, window_bounds = array<i64: 128, 128>}, {pipeline_mode = #tpu.pipeline_mode<synchronous>, transform_indices = @transform_6, window_bounds = array<i64: 1, 128>}, {transform_indices = @transform_7, window_bounds = array<i64: 16, 128>}]} {
    %c0 = arith.constant 0 : index
    %c0_0 = arith.constant 0 : index
    %0 = vector.load %arg1[%c0, %c0_0] : memref<16x16xf32, #tpu.memory_space<vmem>>, vector<16x16xf32>
    %1 = arith.truncf %0 : vector<16x16xf32> to vector<16x16xbf16>
    %c0_1 = arith.constant 0 : index
    %c0_2 = arith.constant 0 : index
    %2 = vector.load %arg2[%c0_1, %c0_2] : memref<16x128xbf16, #tpu.memory_space<vmem>>, vector<16x128xbf16>
    %cst = arith.constant dense<0.000000e+00> : vector<16x128xf32>
    %3 = tpu.matmul %1, %2, %cst {dimension_numbers = #tpu.dot_dimension_numbers<[1], [0], [0], [1], [0, 0, 1, 1], [], []>} : vector<16x16xbf16>, vector<16x128xbf16>, vector<16x128xf32> -> vector<16x128xf32>
    %c0_3 = arith.constant 0 : index
    %c0_4 = arith.constant 0 : index
    %4 = vector.load %arg3[%c0_3, %c0_4] : memref<1x128xf32, #tpu.memory_space<vmem>>, vector<1x128xf32>
    %5 = vector.broadcast %4 : vector<1x128xf32> to vector<16x128xf32>
    %6 = arith.addf %3, %5 : vector<16x128xf32>
    %cst_5 = arith.constant 0.000000e+00 : f32
    %7 = vector.broadcast %cst_5 : f32 to vector<16x128xf32>
    %8 = arith.maximumf %6, %7 : vector<16x128xf32>
    %9 = arith.truncf %8 : vector<16x128xf32> to vector<16x128xbf16>
    %c0_6 = arith.constant 0 : index
    %c0_7 = arith.constant 0 : index
    %10 = vector.load %arg4[%c0_6, %c0_7] : memref<128x128xbf16, #tpu.memory_space<vmem>>, vector<128x128xbf16>
    %cst_8 = arith.constant dense<0.000000e+00> : vector<16x128xf32>
    %11 = tpu.matmul %9, %10, %cst_8 {dimension_numbers = #tpu.dot_dimension_numbers<[1], [0], [0], [1], [0, 0, 1, 1], [], []>} : vector<16x128xbf16>, vector<128x128xbf16>, vector<16x128xf32> -> vector<16x128xf32>
    %c0_9 = arith.constant 0 : index
    %c0_10 = arith.constant 0 : index
    %12 = vector.load %arg5[%c0_9, %c0_10] : memref<1x128xf32, #tpu.memory_space<vmem>>, vector<1x128xf32>
    %13 = vector.broadcast %12 : vector<1x128xf32> to vector<16x128xf32>
    %14 = arith.addf %11, %13 : vector<16x128xf32>
    %cst_11 = arith.constant 0.000000e+00 : f32
    %15 = vector.broadcast %cst_11 : f32 to vector<16x128xf32>
    %16 = arith.maximumf %14, %15 : vector<16x128xf32>
    %17 = arith.truncf %16 : vector<16x128xf32> to vector<16x128xbf16>
    %c0_12 = arith.constant 0 : index
    %c0_13 = arith.constant 0 : index
    %18 = vector.load %arg6[%c0_12, %c0_13] : memref<128x128xbf16, #tpu.memory_space<vmem>>, vector<128x128xbf16>
    %cst_14 = arith.constant dense<0.000000e+00> : vector<16x128xf32>
    %19 = tpu.matmul %17, %18, %cst_14 {dimension_numbers = #tpu.dot_dimension_numbers<[1], [0], [0], [1], [0, 0, 1, 1], [], []>} : vector<16x128xbf16>, vector<128x128xbf16>, vector<16x128xf32> -> vector<16x128xf32>
    %c0_15 = arith.constant 0 : index
    %c0_16 = arith.constant 0 : index
    %20 = vector.load %arg7[%c0_15, %c0_16] : memref<1x128xf32, #tpu.memory_space<vmem>>, vector<1x128xf32>
    %21 = vector.broadcast %20 : vector<1x128xf32> to vector<16x128xf32>
    %22 = arith.addf %19, %21 : vector<16x128xf32>
    %23 = tpu.iota {dimensions = array<i32: 1>} : vector<16x128xi32>
    %c5_i32 = arith.constant 5 : i32
    %24 = vector.broadcast %c5_i32 : i32 to vector<16x128xi32>
    %25 = arith.cmpi sge, %23, %24 : vector<16x128xi32>
    %cst_17 = arith.constant -2.000000e+01 : f32
    %cst_18 = arith.constant 2.000000e+00 : f32
    %26 = vector.broadcast %cst_17 : f32 to vector<16x128xf32>
    %27 = arith.maximumf %26, %22 : vector<16x128xf32>
    %28 = vector.broadcast %cst_18 : f32 to vector<16x128xf32>
    %29 = arith.minimumf %28, %27 : vector<16x128xf32>
    %30 = arith.select %25, %29, %22 : vector<16x128xi1>, vector<16x128xf32>
    %31 = arith.truncf %30 : vector<16x128xf32> to vector<16x128xbf16>
    %c0_19 = arith.constant 0 : index
    %c0_20 = arith.constant 0 : index
    %32 = vector.load %arg8[%c0_19, %c0_20] : memref<16x128xbf16, #tpu.memory_space<vmem>>, vector<16x128xbf16>
    tpu.vector_store %arg8[%c0_19, %c0_20], %31 {strides = array<i32>} : memref<16x128xbf16, #tpu.memory_space<vmem>>, vector<16x128xbf16>,
    return
  }
  func.func @transform_0(%arg0: i32) -> (i32, i32) {
    %c0_i32 = arith.constant 0 : i32
    %c0_i32_0 = arith.constant 0 : i32
    return %arg0, %c0_i32 : i32, i32
  }
  func.func @transform_1(%arg0: i32) -> (i32, i32) {
    %c0_i32 = arith.constant 0 : i32
    %c0_i32_0 = arith.constant 0 : i32
    %c0_i32_1 = arith.constant 0 : i32
    return %c0_i32, %c0_i32_0 : i32, i32
  }
  func.func @transform_2(%arg0: i32) -> (i32, i32) {
    %c0_i32 = arith.constant 0 : i32
    %c0_i32_0 = arith.constant 0 : i32
    %c0_i32_1 = arith.constant 0 : i32
    return %c0_i32, %c0_i32_0 : i32, i32
  }
  func.func @transform_3(%arg0: i32) -> (i32, i32) {
    %c0_i32 = arith.constant 0 : i32
    %c0_i32_0 = arith.constant 0 : i32
    %c0_i32_1 = arith.constant 0 : i32
    return %c0_i32, %c0_i32_0 : i32, i32
  }
  func.func @transform_4(%arg0: i32) -> (i32, i32) {
    %c0_i32 = arith.constant 0 : i32
    %c0_i32_0 = arith.constant 0 : i32
    %c0_i32_1 = arith.constant 0 : i32
    return %c0_i32, %c0_i32_0 : i32, i32
  }
  func.func @transform_5(%arg0: i32) -> (i32, i32) {
    %c0_i32 = arith.constant 0 : i32
    %c0_i32_0 = arith.constant 0 : i32
    %c0_i32_1 = arith.constant 0 : i32
    return %c0_i32, %c0_i32_0 : i32, i32
  }
  func.func @transform_6(%arg0: i32) -> (i32, i32) {
    %c0_i32 = arith.constant 0 : i32
    %c0_i32_0 = arith.constant 0 : i32
    %c0_i32_1 = arith.constant 0 : i32
    return %c0_i32, %c0_i32_0 : i32, i32
  }
  func.func @transform_7(%arg0: i32) -> (i32, i32) {
    %c0_i32 = arith.constant 0 : i32
    %c0_i32_0 = arith.constant 0 : i32
    return %arg0, %c0_i32 : i32, i32
  }
}

</mosaic_0001>

<llo_original>
// kernel: policy_forward.1
$region0: #{policy_forward.1}
  #allocation0 [shape = 'u32[]', space=smem, size = 0x4, offset = 0x4, fixed_abs, tag = 'smem constant byte address 0x4 - core index']
  #allocation1 [shape = 'u32[144,128]{1,0:T(1,128)}', space=vmem, size = 0x12000, scoped, tag = 'internal scratch']
  %s0 = inlined_call_operand.vmem [shape: f32[16,16], index: 0, kind: input, shape index: {}]
  %s1 = inlined_call_operand.vmem [shape: bf16[16,128], index: 1, kind: input, shape index: {}]
  %s2 = inlined_call_operand.vmem [shape: f32[1,128], index: 2, kind: input, shape index: {}]
  %s3 = inlined_call_operand.hbm [shape: bf16[128,128], index: 3, kind: input, shape index: {}]
  %s4 = inlined_call_operand.vmem [shape: f32[1,128], index: 4, kind: input, shape index: {}]
  %s5 = inlined_call_operand.hbm [shape: bf16[128,128], index: 5, kind: input, shape index: {}]
  %s6 = inlined_call_operand.vmem [shape: f32[1,128], index: 6, kind: input, shape index: {}]
  %s7 = inlined_call_operand.vmem [shape: bf16[16,128], index: 7, kind: output, shape index: {}]
  %s8 = sld [smem:[#allocation0]]
  $region46: #{policy_forward.1} parent=0
    _
  %s10 = ssub.s32 1, %s8
  %s11 = scalar_select 0, %s10, %s8
  $region1: #{policy_forward.1} parent=0
    #allocation2 [shape = 'u8[32768]{0}', space=vmem, size = 0x8000, scoped, tag = 'input window, operand 3, single buffered']
    #allocation3 [shape = 's32[1]{0}', space=sflag, size = 0x4, scoped, tag = 'scoped memory for policy_forward.1']
    #allocation4 [shape = 'u8[32768]{0}', space=vmem, size = 0x8000, scoped, tag = 'input window, operand 5, single buffered']
    #allocation5 [shape = 's32[1]{0}', space=sflag, size = 0x4, scoped, tag = 'scoped memory for policy_forward.1']
    %12 = vsyncpa [#allocation3], 0
    %13 = vsyncpa [#allocation5], 0
    // Predicated region
    $region2: #{policy_forward.1} parent=1 // pred_check
      _
    $region3: #{policy_forward.1} parent=1 // pred_check_branch
      %15 = sbr.rel (0) target = $region5
    $region4: #{policy_forward.1} parent=1 // pred_region
      _
    $region5: #{policy_forward.1} parent=1 // pred_fallthru
      _
    // Predicated region
    $region6: #{policy_forward.1} parent=1 // pred_check
      _
    $region7: #{policy_forward.1} parent=1 // pred_check_branch
      %17 = sbr.rel (0) target = $region9
    $region8: #{policy_forward.1} parent=1 // pred_region
      _
    $region9: #{policy_forward.1} parent=1 // pred_fallthru
      _
    // Predicated region
    $region10: #{policy_forward.1} parent=1 // pred_check
      _
    $region11: #{policy_forward.1} parent=1 // pred_check_branch
      %19 = sbr.rel (0) target = $region13
    $region12: #{policy_forward.1} parent=1 // pred_region
      _
    $region13: #{policy_forward.1} parent=1 // pred_fallthru
      _
    // Predicated region
    $region14: #{policy_forward.1} parent=1 // pred_check
      _
    $region15: #{policy_forward.1} parent=1 // pred_check_branch
      %21 = sbr.rel (0) target = $region17
    $region16: #{policy_forward.1} parent=1 // pred_region
      %s23 = ssub.s32 1024, 1024
      %24 = vsyncadd [#allocation3], %s23
      %s25 = sshll.u32 [#allocation2], 4
      %s26 = int_to_ptr.vmem [resolvable:$true] %s25
      %31 = dma.hbm_to_vmem [thread:$0]  %s3, 1024, %s26, [#allocation3], 64, 64, 4
    $region17: #{policy_forward.1} parent=1 // pred_fallthru
      _
    // Predicated region
    $region18: #{policy_forward.1} parent=1 // pred_check
      _
    $region19: #{policy_forward.1} parent=1 // pred_check_branch
      %33 = sbr.rel (0) target = $region21
    $region20: #{policy_forward.1} parent=1 // pred_region
      _
    $region21: #{policy_forward.1} parent=1 // pred_fallthru
      _
    // Predicated region
    $region22: #{policy_forward.1} parent=1 // pred_check
      _
    $region23: #{policy_forward.1} parent=1 // pred_check_branch
      %35 = sbr.rel (0) target = $region25
    $region24: #{policy_forward.1} parent=1 // pred_region
      %s37 = ssub.s32 1024, 1024
      %38 = vsyncadd [#allocation5], %s37
      %s39 = sshll.u32 [#allocation4], 4
      %s40 = int_to_ptr.vmem [resolvable:$true] %s39
      %45 = dma.hbm_to_vmem [thread:$0]  %s5, 1024, %s40, [#allocation5], 64, 64, 4
    $region25: #{policy_forward.1} parent=1 // pred_fallthru
      _
    // Predicated region
    $region26: #{policy_forward.1} parent=1 // pred_check
      _
    $region27: #{policy_forward.1} parent=1 // pred_check_branch
      %47 = sbr.rel (0) target = $region29
    $region28: #{policy_forward.1} parent=1 // pred_region
      _
    $region29: #{policy_forward.1} parent=1 // pred_fallthru
      _
    // Predicated region
    $region30: #{policy_forward.1} parent=1 // pred_check
      _
    $region31: #{policy_forward.1} parent=1 // pred_check_branch
      %49 = sbr.rel (0) target = $region33
    $region32: #{policy_forward.1} parent=1 // pred_region
      %50 = dma.done [#allocation3], 1024
    $region33: #{policy_forward.1} parent=1 // pred_fallthru
      _
    // Predicated region
    $region34: #{policy_forward.1} parent=1 // pred_check
      _
    $region35: #{policy_forward.1} parent=1 // pred_check_branch
      %52 = sbr.rel (0) target = $region37
    $region36: #{policy_forward.1} parent=1 // pred_region
      %53 = dma.done [#allocation5], 1024
    $region37: #{policy_forward.1} parent=1 // pred_fallthru
      _
    %v55 = vld [vmem:[%s0] sm:$0xff]
    %v56 = vld [vmem:[%s0 + $0x8] sm:$0xff]
    %v57 = vpack.c.bf16 %v56, %v55
    %v58 = vld [vmem:[%s1] sm:$0xf]
    %v59 = vld [vmem:[%s1 + $0x4] sm:$0xf]
    %v60 = vld [vmem:[%s2] sm:$0x1]
    %v62 = vlaneseq
    %v63 = vshrl.u32 %v62, 7
    %v64 = vsub.s32 0, %v63
    %v65 = vrot.slane %v60, %v64
    %v69 = vunpack.c.l.b16 %v58
    %v70 = vunpack.c.l.b16 %v59
    %v71 = vpack.c.b16 %v70, %v69
    %vm73 = vcmask 130048
    %v75 = vsel %vm73, %v57, 0
    %77 = vmatprep.subr.bf16.mxu0 0
    %78 = vmatpush1.bf16.msra.mxu0 %v71
    %79 = vmatprep.subr.bf16.mxu0 0
    %80 = vmatpush1.bf16.msra.mxu0 0
    %81 = vmatprep.subr.bf16.mxu0 0
    %82 = vmatpush1.bf16.msra.mxu0 0
    %83 = vmatprep.subr.bf16.mxu0 0
    %84 = vmatpush1.bf16.msra.mxu0 0
    %85 = vmatprep.subr.bf16.mxu0 0
    %86 = vmatpush1.bf16.msra.mxu0 0
    %87 = vmatprep.subr.bf16.mxu0 0
    %88 = vmatpush1.bf16.msra.mxu0 0
    %89 = vmatprep.subr.bf16.mxu0 0
    %90 = vmatpush1.bf16.msra.mxu0 0
    %91 = vmatprep.subr.bf16.mxu0 0
    %92 = vmatpush1.bf16.msra.mxu0 0
    %93 = vmatprep.subr.bf16.mxu0 0
    %94 = vmatpush1.bf16.msra.mxu0 0
    %95 = vmatprep.subr.bf16.mxu0 0
    %96 = vmatpush1.bf16.msra.mxu0 0
    %97 = vmatprep.subr.bf16.mxu0 0
    %98 = vmatpush1.bf16.msra.mxu0 0
    %99 = vmatprep.subr.bf16.mxu0 0
    %100 = vmatpush1.bf16.msra.mxu0 0
    %101 = vmatprep.subr.bf16.mxu0 0
    %102 = vmatpush1.bf16.msra.mxu0 0
    %103 = vmatprep.subr.bf16.mxu0 0
    %104 = vmatpush1.bf16.msra.mxu0 0
    %105 = vmatprep.subr.bf16.mxu0 0
    %106 = vmatpush1.bf16.msra.mxu0 0
    %107 = vmatprep.subr.bf16.mxu0 0
    %108 = vmatpush1.bf16.msra.mxu0 0
    %109 = vmatprep.mubr.bf16.mxu0 0
    %110 = vmatmul.mubr.bf16.gmra.mrb[0].mxu0 %v75
    %v111 = vpop.f32.mrb[0].mxu0
    %v112 = vadd.f32 %v65, %v111
    %v113 = vpop.f32.mrb[0].mxu0
    %v114 = vpop.f32.mrb[0].mxu0
    %v115 = vadd.f32 %v65, %v114
    %v116 = vpop.f32.mrb[0].mxu0
    %117 = vdwg.mxu0
    %v118 = vmax.f32 %v112, 0.0
    %v119 = vmax.f32 %v115, 0.0
    %v120 = vpack.c.bf16 %v119, %v118
    %v121 = vld [vmem:[#allocation2] sm:$0xf]
    %v122 = vld [vmem:[#allocation2 + $0x4] sm:$0xf]
    %v123 = vld [vmem:[#allocation2 + $0x8] sm:$0xf]
    %v124 = vld [vmem:[#allocation2 + $0xc] sm:$0xf]
    %v125 = vld [vmem:[#allocation2 + $0x10] sm:$0xf]
    %v126 = vld [vmem:[#allocation2 + $0x14] sm:$0xf]
    %v127 = vld [vmem:[#allocation2 + $0x18] sm:$0xf]
    %v128 = vld [vmem:[#allocation2 + $0x1c] sm:$0xf]
    %v129 = vld [vmem:[#allocation2 + $0x20] sm:$0xf]
    %v130 = vld [vmem:[#allocation2 + $0x24] sm:$0xf]
    %v131 = vld [vmem:[#allocation2 + $0x28] sm:$0xf]
    %v132 = vld [vmem:[#allocation2 + $0x2c] sm:$0xf]
    %v133 = vld [vmem:[#allocation2 + $0x30] sm:$0xf]
    %v134 = vld [vmem:[#allocation2 + $0x34] sm:$0xf]
    %v135 = vld [vmem:[#allocation2 + $0x38] sm:$0xf]
    %v136 = vld [vmem:[#allocation2 + $0x3c] sm:$0xf]
    %v137 = vld [vmem:[%s4] sm:$0x1]
    %v139 = vlaneseq
    %v140 = vshrl.u32 %v139, 7
    %v141 = vsub.s32 0, %v140
    %v142 = vrot.slane %v137, %v141
    %v160 = vunpack.c.l.b16 %v121
    %v161 = vunpack.c.l.b16 %v122
    %v162 = vunpack.c.l.b16 %v123
    %v163 = vunpack.c.l.b16 %v124
    %v164 = vunpack.c.l.b16 %v125
    %v165 = vunpack.c.l.b16 %v126
    %v166 = vunpack.c.l.b16 %v127
    %v167 = vunpack.c.l.b16 %v128
    %v168 = vunpack.c.l.b16 %v129
    %v169 = vunpack.c.l.b16 %v130
    %v170 = vunpack.c.l.b16 %v131
    %v171 = vunpack.c.l.b16 %v132
    %v172 = vunpack.c.l.b16 %v133
    %v173 = vunpack.c.l.b16 %v134
    %v174 = vunpack.c.l.b16 %v135
    %v175 = vunpack.c.l.b16 %v136
    %v176 = vpack.c.b16 %v161, %v160
    %v177 = vpack.c.b16 %v163, %v162
    %v178 = vpack.c.b16 %v165, %v164
    %v179 = vpack.c.b16 %v167, %v166
    %v180 = vpack.c.b16 %v169, %v168
    %v181 = vpack.c.b16 %v171, %v170
    %v182 = vpack.c.b16 %v173, %v172
    %v183 = vpack.c.b16 %v175, %v174
    %192 = vmatprep.subr.bf16.mxu0 0
    %193 = vmatpush1.bf16.msra.mxu0 %v176
    %194 = vmatprep.subr.bf16.mxu0 0
    %195 = vmatpush1.bf16.msra.mxu0 %v177
    %196 = vmatprep.subr.bf16.mxu0 0
    %197 = vmatpush1.bf16.msra.mxu0 %v178
    %198 = vmatprep.subr.bf16.mxu0 0
    %199 = vmatpush1.bf16.msra.mxu0 %v179
    %200 = vmatprep.subr.bf16.mxu0 0
    %201 = vmatpush1.bf16.msra.mxu0 %v180
    %202 = vmatprep.subr.bf16.mxu0 0
    %203 = vmatpush1.bf16.msra.mxu0 %v181
    %204 = vmatprep.subr.bf16.mxu0 0
    %205 = vmatpush1.bf16.msra.mxu0 %v182
    %206 = vmatprep.subr.bf16.mxu0 0
    %207 = vmatpush1.bf16.msra.mxu0 %v183
    %208 = vmatprep.subr.bf16.mxu0 0
    %209 = vmatpush1.bf16.msra.mxu0 0
    %210 = vmatprep.subr.bf16.mxu0 0
    %211 = vmatpush1.bf16.msra.mxu0 0
    %212 = vmatprep.subr.bf16.mxu0 0
    %213 = vmatpush1.bf16.msra.mxu0 0
    %214 = vmatprep.subr.bf16.mxu0 0
    %215 = vmatpush1.bf16.msra.mxu0 0
    %216 = vmatprep.subr.bf16.mxu0 0
    %217 = vmatpush1.bf16.msra.mxu0 0
    %218 = vmatprep.subr.bf16.mxu0 0
    %219 = vmatpush1.bf16.msra.mxu0 0
    %220 = vmatprep.subr.bf16.mxu0 0
    %221 = vmatpush1.bf16.msra.mxu0 0
    %222 = vmatprep.subr.bf16.mxu0 0
    %223 = vmatpush1.bf16.msra.mxu0 0
    %224 = vmatprep.mubr.bf16.mxu0 0
    %225 = vmatmul.mubr.bf16.gmra.mrb[0].mxu0 %v120
    %v226 = vpop.f32.mrb[0].mxu0
    %v227 = vadd.f32 %v142, %v226
    %v228 = vpop.f32.mrb[0].mxu0
    %v229 = vpop.f32.mrb[0].mxu0
    %v230 = vadd.f32 %v142, %v229
    %v231 = vpop.f32.mrb[0].mxu0
    %232 = vdwg.mxu0
    %v233 = vmax.f32 %v227, 0.0
    %v234 = vmax.f32 %v230, 0.0
    %v235 = vpack.c.bf16 %v234, %v233
    %v236 = vld [vmem:[#allocation4] sm:$0xf]
    %v237 = vld [vmem:[#allocation4 + $0x4] sm:$0xf]
    %v238 = vld [vmem:[#allocation4 + $0x8] sm:$0xf]
    %v239 = vld [vmem:[#allocation4 + $0xc] sm:$0xf]
    %v240 = vld [vmem:[#allocation4 + $0x10] sm:$0xf]
    %v241 = vld [vmem:[#allocation4 + $0x14] sm:$0xf]
    %v242 = vld [vmem:[#allocation4 + $0x18] sm:$0xf]
    %v243 = vld [vmem:[#allocation4 + $0x1c] sm:$0xf]
    %v244 = vld [vmem:[#allocation4 + $0x20] sm:$0xf]
    %v245 = vld [vmem:[#allocation4 + $0x24] sm:$0xf]
    %v246 = vld [vmem:[#allocation4 + $0x28] sm:$0xf]
    %v247 = vld [vmem:[#allocation4 + $0x2c] sm:$0xf]
    %v248 = vld [vmem:[#allocation4 + $0x30] sm:$0xf]
    %v249 = vld [vmem:[#allocation4 + $0x34] sm:$0xf]
    %v250 = vld [vmem:[#allocation4 + $0x38] sm:$0xf]
    %v251 = vld [vmem:[#allocation4 + $0x3c] sm:$0xf]
    %v252 = vld [vmem:[%s6] sm:$0x1]
    %v254 = vlaneseq
    %v255 = vshrl.u32 %v254, 7
    %v256 = vsub.s32 0, %v255
    %v257 = vrot.slane %v252, %v256
    %v275 = vunpack.c.l.b16 %v236
    %v276 = vunpack.c.l.b16 %v237
    %v277 = vunpack.c.l.b16 %v238
    %v278 = vunpack.c.l.b16 %v239
    %v279 = vunpack.c.l.b16 %v240
    %v280 = vunpack.c.l.b16 %v241
    %v281 = vunpack.c.l.b16 %v242
    %v282 = vunpack.c.l.b16 %v243
    %v283 = vunpack.c.l.b16 %v244
    %v284 = vunpack.c.l.b16 %v245
    %v285 = vunpack.c.l.b16 %v246
    %v286 = vunpack.c.l.b16 %v247
    %v287 = vunpack.c.l.b16 %v248
    %v288 = vunpack.c.l.b16 %v249
    %v289 = vunpack.c.l.b16 %v250
    %v290 = vunpack.c.l.b16 %v251
    %v291 = vpack.c.b16 %v276, %v275
    %v292 = vpack.c.b16 %v278, %v277
    %v293 = vpack.c.b16 %v280, %v279
    %v294 = vpack.c.b16 %v282, %v281
    %v295 = vpack.c.b16 %v284, %v283
    %v296 = vpack.c.b16 %v286, %v285
    %v297 = vpack.c.b16 %v288, %v287
    %v298 = vpack.c.b16 %v290, %v289
    %307 = vmatprep.subr.bf16.mxu0 0
    %308 = vmatpush1.bf16.msra.mxu0 %v291
    %309 = vmatprep.subr.bf16.mxu0 0
    %310 = vmatpush1.bf16.msra.mxu0 %v292
    %311 = vmatprep.subr.bf16.mxu0 0
    %312 = vmatpush1.bf16.msra.mxu0 %v293
    %313 = vmatprep.subr.bf16.mxu0 0
    %314 = vmatpush1.bf16.msra.mxu0 %v294
    %315 = vmatprep.subr.bf16.mxu0 0
    %316 = vmatpush1.bf16.msra.mxu0 %v295
    %317 = vmatprep.subr.bf16.mxu0 0
    %318 = vmatpush1.bf16.msra.mxu0 %v296
    %319 = vmatprep.subr.bf16.mxu0 0
    %320 = vmatpush1.bf16.msra.mxu0 %v297
    %321 = vmatprep.subr.bf16.mxu0 0
    %322 = vmatpush1.bf16.msra.mxu0 %v298
    %323 = vmatprep.subr.bf16.mxu0 0
    %324 = vmatpush1.bf16.msra.mxu0 0
    %325 = vmatprep.subr.bf16.mxu0 0
    %326 = vmatpush1.bf16.msra.mxu0 0
    %327 = vmatprep.subr.bf16.mxu0 0
    %328 = vmatpush1.bf16.msra.mxu0 0
    %329 = vmatprep.subr.bf16.mxu0 0
    %330 = vmatpush1.bf16.msra.mxu0 0
    %331 = vmatprep.subr.bf16.mxu0 0
    %332 = vmatpush1.bf16.msra.mxu0 0
    %333 = vmatprep.subr.bf16.mxu0 0
    %334 = vmatpush1.bf16.msra.mxu0 0
    %335 = vmatprep.subr.bf16.mxu0 0
    %336 = vmatpush1.bf16.msra.mxu0 0
    %337 = vmatprep.subr.bf16.mxu0 0
    %338 = vmatpush1.bf16.msra.mxu0 0
    %339 = vmatprep.mubr.bf16.mxu0 0
    %340 = vmatmul.mubr.bf16.gmra.mrb[0].mxu0 %v235
    %v341 = vpop.f32.mrb[0].mxu0
    %v342 = vadd.f32 %v257, %v341
    %v343 = vpop.f32.mrb[0].mxu0
    %v344 = vpop.f32.mrb[0].mxu0
    %v345 = vadd.f32 %v257, %v344
    %v346 = vpop.f32.mrb[0].mxu0
    %347 = vdwg.mxu0
    %v348 = vlaneseq
    %v349 = vand.u32 %v348, 127
    %vm350 = vcmp.ge.s32.totalorder %v349, 5
    %v351 = vmax.f32 %v342, -20.0
    %v352 = vmax.f32 %v345, -20.0
    %v353 = vmin.f32 %v351, 2.0
    %v354 = vmin.f32 %v352, 2.0
    %v355 = vsel %vm350, %v353, %v342
    %v356 = vsel %vm350, %v354, %v345
    %v357 = vpack.c.bf16 %v356, %v355
    %v359 = vunpack.c.l.b16 %v357
    %v360 = vunpack.c.h.b16 %v357
    %v361 = vpack.c.b16 %v359, %v359
    %v362 = vpack.c.b16 %v360, %v360
    %365 = vst [vmem:[%s7] sm:$0xf] %v361
    %366 = vst [vmem:[%s7 + $0x4] sm:$0xf] %v362
    // Predicated region
    $region38: #{policy_forward.1} parent=1 // pred_check
      _
    $region39: #{policy_forward.1} parent=1 // pred_check_branch
      %368 = sbr.rel (0) target = $region41
    $region40: #{policy_forward.1} parent=1 // pred_region
      _
    $region41: #{policy_forward.1} parent=1 // pred_fallthru
      _
    // Predicated region
    $region42: #{policy_forward.1} parent=1 // pred_check
      _
    $region43: #{policy_forward.1} parent=1 // pred_check_branch
      %370 = sbr.rel (0) target = $region45
    $region44: #{policy_forward.1} parent=1 // pred_region
      _
    $region45: #{policy_forward.1} parent=1 // pred_fallthru
      _
    %371 = vsyncpa [#allocation3], 1
    %372 = vsyncpa [#allocation5], 1

</llo_original>
